<compile_context>
chip_gen: v5e
topology: v5e:2x2
jax: 0.10.0
libtpu: 0.0.40
codegen_flags: <defaults>
</compile_context>

<pallas_src>
import jax
import jax.numpy as jnp
from jax.experimental import pallas as pl
from jax.experimental.pallas import tpu as pltpu


def _pointwise_conv_kernel(x_ref, w_ref, b_ref, o_ref):
    """One (C_in, rows_tile, lanes) slab of one batch element -> (C_out, ...).

    x_ref : (C_in, rows_tile, lanes)  VMEM  (lanes = 128 or full spatial)
    w_ref : (C_out * C_in,)           SMEM  f32 scalars, PyTorch row-major
    b_ref : (C_out,)                  SMEM  f32 scalars
    o_ref : (C_out, rows_tile, lanes) VMEM  caller's dtype
    """
    c_in = x_ref.shape[0]
    c_out = o_ref.shape[0]

    # Hoisted: load + upcast each input-channel slab exactly once (in-register
    # f32; I/O stays in the caller's dtype).
    xs = [x_ref[ci].astype(jnp.float32) for ci in range(c_in)]

    # C_out * C_in unrolled scalar*vector FMAs on the VPU (12 for 4 -> 3).
    for co in range(c_out):
        acc = xs[0] * w_ref[co * c_in] + b_ref[co]
        for ci in range(1, c_in):
            acc = acc + xs[ci] * w_ref[co * c_in + ci]
        o_ref[co] = acc.astype(o_ref.dtype)


def _pick_rows_tile(rows, max_rows):
    """Largest row tile that (a) is <= max_rows and (b) divides `rows` exactly
    and (c) is a multiple of 8 (or equals the full extent)."""
    if rows <= max_rows:
        return rows
    t = (max_rows // 8) * 8
    while t >= 8:
        if rows % t == 0:
            return t
        t -= 8
    # TODO(synk): `rows` has no multiple-of-8 divisor <= max_rows; fall back to
    # one full-extent row tile (avoids masked tiles / pad+slice passes; may
    # exceed the target per-step size only for pathological image sizes).
    return rows


def outconv_forward(x_nchw, weight, bias, *, target_block_pixels=64 * 1024):
    """1x1 Conv2d forward (the UNet OutConv head).

    x_nchw : (N, C_in, H, W)   any float dtype (kept as kernel I/O dtype)
    weight : (C_out, C_in, 1, 1)   -- PyTorch Conv2d layout
    bias   : (C_out,)
    returns: (N, C_out, H, W)  in x_nchw.dtype
    """
    N, C_in, H, W = x_nchw.shape
    C_out = weight.shape[0]
    S = H * W
    itemsize = x_nchw.dtype.itemsize

    # Tiny parameters -> flat f32 scalars in SMEM.
    w_flat = weight.reshape(C_out * C_in).astype(jnp.float32)
    b_flat = bias.reshape(C_out).astype(jnp.float32)

    # Spatial axis as dense (rows, 128) slabs (free, contiguous reshape).
    if S % 128 == 0:
        lanes = 128
    else:
        # TODO(synk): spatial extent not a multiple of 128 -> one full-width
        # lane tile (no pad/slice HBM passes; fine for small / odd images).
        lanes = S
    rows = S // lanes
    x_rows = x_nchw.reshape(N, C_in, rows, lanes)

    # Rows per grid step: big enough that each step moves multi-MiB of HBM
    # traffic, small enough for the v5e 16 MiB scoped-VMEM default.
    max_rows = max(8, (target_block_pixels // lanes) // 8 * 8)
    if N == 1:
        # v7x megacore: with a single batch element, split the spatial axis so
        # there are >= 2 parallel grid steps (both TensorCores get work).
        max_rows = min(max_rows, max(8, (rows // 2) // 8 * 8))
    rows_tile = _pick_rows_tile(rows, max_rows)
    num_row_tiles = rows // rows_tile
    grid = (N, num_row_tiles)

    out = pl.pallas_call(
        _pointwise_conv_kernel,
        out_shape=jax.ShapeDtypeStruct((N, C_out, rows, lanes), x_nchw.dtype),
        grid_spec=pltpu.PrefetchScalarGridSpec(
            num_scalar_prefetch=0,
            grid=grid,
            in_specs=[
                # (batch squeezed, all channels, one dense row slab)
                pl.BlockSpec((None, C_in, rows_tile, lanes),
                             lambda n, r: (n, 0, r, 0)),
                # tiny weight / bias: whole arrays resident in SMEM
                pl.BlockSpec(memory_space=pltpu.MemorySpace.SMEM),
                pl.BlockSpec(memory_space=pltpu.MemorySpace.SMEM),
            ],
            out_specs=pl.BlockSpec((None, C_out, rows_tile, lanes),
                                   lambda n, r: (n, 0, r, 0)),
        ),
        compiler_params=pltpu.CompilerParams(
            dimension_semantics=("parallel", "parallel")),
        cost_estimate=pl.CostEstimate(
            flops=2 * N * S * C_in * C_out,
            transcendentals=0,
            bytes_accessed=itemsize * N * S * (C_in + C_out)
            + 4 * (C_in * C_out + C_out),
        ),
    )(x_rows, w_flat, b_flat)

    return out.reshape(N, C_out, H, W)


def outconv_reference(x, weight, bias):
    """Plain-JAX reference (same math as nn.Conv2d(kernel_size=1))."""
    c_out, c_in = weight.shape[0], weight.shape[1]
    w = weight.reshape(c_out, c_in).astype(jnp.float32)
    y = jnp.einsum("nchw,oc->nohw", x.astype(jnp.float32), w)
    return y + bias.astype(jnp.float32).reshape(1, -1, 1, 1)


if __name__ == "__main__":
    # Small shapes consistent with OutConv(in_channels=4, out_channels=3).
    N, C_in, C_out, H, W = 2, 4, 3, 16, 16

    key = jax.random.PRNGKey(0)
    kx, kw, kb = jax.random.split(key, 3)

    # Deterministic synthetic parameters (same shapes as nn.Conv2d(4, 3, 1)).
    weight = jax.random.normal(kw, (C_out, C_in, 1, 1), dtype=jnp.float32) * 0.1
    bias = jax.random.normal(kb, (C_out,), dtype=jnp.float32) * 0.1

    # 1) f32, single row tile per batch element.
    x = jax.random.normal(kx, (N, C_in, H, W), dtype=jnp.float32)
    y = outconv_forward(x, weight, bias)
    jax.block_until_ready(y)
    assert y.shape == (N, C_out, H, W)
    assert jnp.allclose(y, outconv_reference(x, weight, bias),
                        atol=1e-5, rtol=1e-5)

    # 2) bf16 I/O (halves HBM bytes; arithmetic stays f32 inside the kernel).
    x_bf = x.astype(jnp.bfloat16)
    y_bf = outconv_forward(x_bf, weight, bias)
    jax.block_until_ready(y_bf)
    assert y_bf.dtype == jnp.bfloat16
    assert jnp.allclose(y_bf.astype(jnp.float32),
                        outconv_reference(x_bf, weight, bias),
                        atol=2e-2, rtol=2e-2)

    # 3) Spatial extent not a multiple of 128 (full-width lane tile, no pad).
    x_odd = jax.random.normal(kx, (2, C_in, 10, 10), dtype=jnp.float32)
    y_odd = outconv_forward(x_odd, weight, bias)
    jax.block_until_ready(y_odd)
    assert jnp.allclose(y_odd, outconv_reference(x_odd, weight, bias),
                        atol=1e-5, rtol=1e-5)

    # 4) Multi-row-tile grid (several spatial steps) with N == 1.
    x_big = jax.random.normal(kx, (1, C_in, 64, 64), dtype=jnp.float32)
    y_big = outconv_forward(x_big, weight, bias, target_block_pixels=1024)
    jax.block_until_ready(y_big)
    assert jnp.allclose(y_big, outconv_reference(x_big, weight, bias),
                        atol=1e-5, rtol=1e-5)

    print("KERNEL_OK")
</pallas_src>

<mosaic_0001>
module attributes {stable_mosaic.version = 11 : i64} {
  func.func @_pointwise_conv_kernel(%arg0: i32, %arg1: i32, %arg2: memref<1x4x2x128xf32, #tpu.memory_space<vmem>>, %arg3: memref<12xf32, #tpu.memory_space<smem>>, %arg4: memref<3xf32, #tpu.memory_space<smem>>, %arg5: memref<1x3x2x128xf32, #tpu.memory_space<vmem>>) attributes {dimension_semantics = [#tpu.dimension_semantics<parallel>, #tpu.dimension_semantics<parallel>], iteration_bounds = array<i64: 2, 1>, scalar_prefetch = 0 : i64, scratch_operands = 0 : i64, tpu.core_type = #tpu.core_type<tc>, window_params = [{transform_indices = @transform_0, window_bounds = array<i64: 1, 4, 2, 128>}, {transform_indices = @transform_1, window_bounds = array<i64: 12>}, {transform_indices = @transform_2, window_bounds = array<i64: 3>}, {transform_indices = @transform_3, window_bounds = array<i64: 1, 3, 2, 128>}]} {
    %c0 = arith.constant 0 : index
    %c0_0 = arith.constant 0 : index
    %c0_1 = arith.constant 0 : index
    %c0_2 = arith.constant 0 : index
    %0 = vector.load %arg2[%c0, %c0_0, %c0_1, %c0_2] : memref<1x4x2x128xf32, #tpu.memory_space<vmem>>, vector<1x1x2x128xf32>
    %1 = vector.shape_cast %0 : vector<1x1x2x128xf32> to vector<2x128xf32>
    %c0_3 = arith.constant 0 : index
    %c1 = arith.constant 1 : index
    %c0_4 = arith.constant 0 : index
    %c0_5 = arith.constant 0 : index
    %2 = vector.load %arg2[%c0_3, %c1, %c0_4, %c0_5] : memref<1x4x2x128xf32, #tpu.memory_space<vmem>>, vector<1x1x2x128xf32>
    %3 = vector.shape_cast %2 : vector<1x1x2x128xf32> to vector<2x128xf32>
    %c0_6 = arith.constant 0 : index
    %c2 = arith.constant 2 : index
    %c0_7 = arith.constant 0 : index
    %c0_8 = arith.constant 0 : index
    %4 = vector.load %arg2[%c0_6, %c2, %c0_7, %c0_8] : memref<1x4x2x128xf32, #tpu.memory_space<vmem>>, vector<1x1x2x128xf32>
    %5 = vector.shape_cast %4 : vector<1x1x2x128xf32> to vector<2x128xf32>
    %c0_9 = arith.constant 0 : index
    %c3 = arith.constant 3 : index
    %c0_10 = arith.constant 0 : index
    %c0_11 = arith.constant 0 : index
    %6 = vector.load %arg2[%c0_9, %c3, %c0_10, %c0_11] : memref<1x4x2x128xf32, #tpu.memory_space<vmem>>, vector<1x1x2x128xf32>
    %7 = vector.shape_cast %6 : vector<1x1x2x128xf32> to vector<2x128xf32>
    %c0_12 = arith.constant 0 : index
    %8 = memref.load %arg3[%c0_12] : memref<12xf32, #tpu.memory_space<smem>>
    %9 = vector.broadcast %8 : f32 to vector<2x128xf32>
    %10 = arith.mulf %1, %9 : vector<2x128xf32>
    %c0_13 = arith.constant 0 : index
    %11 = memref.load %arg4[%c0_13] : memref<3xf32, #tpu.memory_space<smem>>
    %12 = vector.broadcast %11 : f32 to vector<2x128xf32>
    %13 = arith.addf %10, %12 : vector<2x128xf32>
    %c1_14 = arith.constant 1 : index
    %14 = memref.load %arg3[%c1_14] : memref<12xf32, #tpu.memory_space<smem>>
    %15 = vector.broadcast %14 : f32 to vector<2x128xf32>
    %16 = arith.mulf %3, %15 : vector<2x128xf32>
    %17 = arith.addf %13, %16 : vector<2x128xf32>
    %c2_15 = arith.constant 2 : index
    %18 = memref.load %arg3[%c2_15] : memref<12xf32, #tpu.memory_space<smem>>
    %19 = vector.broadcast %18 : f32 to vector<2x128xf32>
    %20 = arith.mulf %5, %19 : vector<2x128xf32>
    %21 = arith.addf %17, %20 : vector<2x128xf32>
    %c3_16 = arith.constant 3 : index
    %22 = memref.load %arg3[%c3_16] : memref<12xf32, #tpu.memory_space<smem>>
    %23 = vector.broadcast %22 : f32 to vector<2x128xf32>
    %24 = arith.mulf %7, %23 : vector<2x128xf32>
    %25 = arith.addf %21, %24 : vector<2x128xf32>
    %c0_17 = arith.constant 0 : index
    %c0_18 = arith.constant 0 : index
    %c0_19 = arith.constant 0 : index
    %c0_20 = arith.constant 0 : index
    %26 = vector.load %arg5[%c0_17, %c0_18, %c0_19, %c0_20] : memref<1x3x2x128xf32, #tpu.memory_space<vmem>>, vector<1x1x2x128xf32>
    %27 = vector.shape_cast %26 : vector<1x1x2x128xf32> to vector<2x128xf32>
    %28 = vector.shape_cast %25 : vector<2x128xf32> to vector<1x1x2x128xf32>
    tpu.vector_store %arg5[%c0_17, %c0_18, %c0_19, %c0_20], %28 {strides = array<i32>} : memref<1x3x2x128xf32, #tpu.memory_space<vmem>>, vector<1x1x2x128xf32>,
    %c4 = arith.constant 4 : index
    %29 = memref.load %arg3[%c4] : memref<12xf32, #tpu.memory_space<smem>>
    %30 = vector.broadcast %29 : f32 to vector<2x128xf32>
    %31 = arith.mulf %1, %30 : vector<2x128xf32>
    %c1_21 = arith.constant 1 : index
    %32 = memref.load %arg4[%c1_21] : memref<3xf32, #tpu.memory_space<smem>>
    %33 = vector.broadcast %32 : f32 to vector<2x128xf32>
    %34 = arith.addf %31, %33 : vector<2x128xf32>
    %c5 = arith.constant 5 : index
    %35 = memref.load %arg3[%c5] : memref<12xf32, #tpu.memory_space<smem>>
    %36 = vector.broadcast %35 : f32 to vector<2x128xf32>
    %37 = arith.mulf %3, %36 : vector<2x128xf32>
    %38 = arith.addf %34, %37 : vector<2x128xf32>
    %c6 = arith.constant 6 : index
    %39 = memref.load %arg3[%c6] : memref<12xf32, #tpu.memory_space<smem>>
    %40 = vector.broadcast %39 : f32 to vector<2x128xf32>
    %41 = arith.mulf %5, %40 : vector<2x128xf32>
    %42 = arith.addf %38, %41 : vector<2x128xf32>
    %c7 = arith.constant 7 : index
    %43 = memref.load %arg3[%c7] : memref<12xf32, #tpu.memory_space<smem>>
    %44 = vector.broadcast %43 : f32 to vector<2x128xf32>
    %45 = arith.mulf %7, %44 : vector<2x128xf32>
    %46 = arith.addf %42, %45 : vector<2x128xf32>
    %c0_22 = arith.constant 0 : index
    %c1_23 = arith.constant 1 : index
    %c0_24 = arith.constant 0 : index
    %c0_25 = arith.constant 0 : index
    %47 = vector.load %arg5[%c0_22, %c1_23, %c0_24, %c0_25] : memref<1x3x2x128xf32, #tpu.memory_space<vmem>>, vector<1x1x2x128xf32>
    %48 = vector.shape_cast %47 : vector<1x1x2x128xf32> to vector<2x128xf32>
    %49 = vector.shape_cast %46 : vector<2x128xf32> to vector<1x1x2x128xf32>
    tpu.vector_store %arg5[%c0_22, %c1_23, %c0_24, %c0_25], %49 {strides = array<i32>} : memref<1x3x2x128xf32, #tpu.memory_space<vmem>>, vector<1x1x2x128xf32>,
    %c8 = arith.constant 8 : index
    %50 = memref.load %arg3[%c8] : memref<12xf32, #tpu.memory_space<smem>>
    %51 = vector.broadcast %50 : f32 to vector<2x128xf32>
    %52 = arith.mulf %1, %51 : vector<2x128xf32>
    %c2_26 = arith.constant 2 : index
    %53 = memref.load %arg4[%c2_26] : memref<3xf32, #tpu.memory_space<smem>>
    %54 = vector.broadcast %53 : f32 to vector<2x128xf32>
    %55 = arith.addf %52, %54 : vector<2x128xf32>
    %c9 = arith.constant 9 : index
    %56 = memref.load %arg3[%c9] : memref<12xf32, #tpu.memory_space<smem>>
    %57 = vector.broadcast %56 : f32 to vector<2x128xf32>
    %58 = arith.mulf %3, %57 : vector<2x128xf32>
    %59 = arith.addf %55, %58 : vector<2x128xf32>
    %c10 = arith.constant 10 : index
    %60 = memref.load %arg3[%c10] : memref<12xf32, #tpu.memory_space<smem>>
    %61 = vector.broadcast %60 : f32 to vector<2x128xf32>
    %62 = arith.mulf %5, %61 : vector<2x128xf32>
    %63 = arith.addf %59, %62 : vector<2x128xf32>
    %c11 = arith.constant 11 : index
    %64 = memref.load %arg3[%c11] : memref<12xf32, #tpu.memory_space<smem>>
    %65 = vector.broadcast %64 : f32 to vector<2x128xf32>
    %66 = arith.mulf %7, %65 : vector<2x128xf32>
    %67 = arith.addf %63, %66 : vector<2x128xf32>
    %c0_27 = arith.constant 0 : index
    %c2_28 = arith.constant 2 : index
    %c0_29 = arith.constant 0 : index
    %c0_30 = arith.constant 0 : index
    %68 = vector.load %arg5[%c0_27, %c2_28, %c0_29, %c0_30] : memref<1x3x2x128xf32, #tpu.memory_space<vmem>>, vector<1x1x2x128xf32>
    %69 = vector.shape_cast %68 : vector<1x1x2x128xf32> to vector<2x128xf32>
    %70 = vector.shape_cast %67 : vector<2x128xf32> to vector<1x1x2x128xf32>
    tpu.vector_store %arg5[%c0_27, %c2_28, %c0_29, %c0_30], %70 {strides = array<i32>} : memref<1x3x2x128xf32, #tpu.memory_space<vmem>>, vector<1x1x2x128xf32>,
    return
  }
  func.func @transform_0(%arg0: i32, %arg1: i32) -> (i32, i32, i32, i32) {
    %c0_i32 = arith.constant 0 : i32
    %c0_i32_0 = arith.constant 0 : i32
    %c0_i32_1 = arith.constant 0 : i32
    return %arg0, %c0_i32, %arg1, %c0_i32_0 : i32, i32, i32, i32
  }
  func.func @transform_1(%arg0: i32, %arg1: i32) -> i32 {
    %c0_i32 = arith.constant 0 : i32
    %c0_i32_0 = arith.constant 0 : i32
    return %c0_i32 : i32
  }
  func.func @transform_2(%arg0: i32, %arg1: i32) -> i32 {
    %c0_i32 = arith.constant 0 : i32
    %c0_i32_0 = arith.constant 0 : i32
    return %c0_i32 : i32
  }
  func.func @transform_3(%arg0: i32, %arg1: i32) -> (i32, i32, i32, i32) {
    %c0_i32 = arith.constant 0 : i32
    %c0_i32_0 = arith.constant 0 : i32
    %c0_i32_1 = arith.constant 0 : i32
    return %arg0, %c0_i32, %arg1, %c0_i32_0 : i32, i32, i32, i32
  }
}

</mosaic_0001>

<llo_original>
// kernel: tpu_custom_call.1
$region0: #{tpu_custom_call.1}
  #allocation0 [shape = 'u32[]', space=smem, size = 0x4, offset = 0x4, fixed_abs, tag = 'smem constant byte address 0x4 - core index']
  #allocation1 [shape = 'u32[72,128]{1,0:T(1,128)}', space=vmem, size = 0x9000, scoped, tag = 'internal scratch']
  %s0 = inlined_call_operand.hbm [shape: f32[2,4,2,128], index: 0, kind: input, shape index: {}]
  %s1 = inlined_call_operand.hbm [shape: f32[12], index: 1, kind: input, shape index: {}]
  %s2 = inlined_call_operand.vmem [shape: f32[3], index: 2, kind: input, shape index: {}]
  %s3 = inlined_call_operand.hbm [shape: f32[2,3,2,128], index: 3, kind: output, shape index: {}]
  %s4 = sld [smem:[#allocation0]]
  $region57: #{tpu_custom_call.1} parent=0
    _
  %s6 = ssub.s32 1, %s4
  %s7 = scalar_select 0, %s6, %s4
  $region1: #{tpu_custom_call.1} parent=0
    #allocation2 [shape = 'u8[8192]{0}', space=vmem, size = 0x2000, scoped, tag = 'input window, operand 0']
    #allocation3 [shape = 's32[2]{0}', space=sflag, size = 0x8, scoped, tag = 'scoped memory for tpu_custom_call.1']
    #allocation4 [shape = 's32[2]{0}', space=sflag, size = 0x8, scoped, tag = 'scoped memory for tpu_custom_call.1']
    #allocation5 [shape = 's32[2]{0}', space=sflag, size = 0x8, scoped, tag = 'scoped memory for tpu_custom_call.1']
    #allocation6 [shape = 's32[2]{0}', space=sflag, size = 0x8, scoped, tag = 'scoped memory for tpu_custom_call.1']
    #allocation7 [shape = 'u8[512]{0}', space=smem, size = 0x200, scoped, tag = 'input window, operand 1, single buffered']
    #allocation8 [shape = 'u8[512]{0}', space=smem, size = 0x200, scoped, tag = 'input window, operand 2, single buffered']
    #allocation9 [shape = 'u8[6144]{0}', space=vmem, size = 0x1800, scoped, tag = 'output window, operand 0']
    %8 = vsyncpa [#allocation3], 0
    %s9 = scalar_lea.sflag [#allocation3], 1
    %10 = vsyncpa %s9, 0
    %11 = vsyncpa [#allocation5], 0
    %12 = vsyncpa [#allocation6], 0
    %13 = vsyncpa [#allocation4], 0
    %s14 = scalar_lea.sflag [#allocation4], 1
    %15 = vsyncpa %s14, 0
    loop: start=0, step=1, limit=4
    $region2: #{tpu_custom_call.1} parent=1 // loop_pre_header
      _
    $region3: #{tpu_custom_call.1} parent=1 // loop_header
      %s17 = sphi 0, %s21
      %p18 = scmp.ge.s32.totalorder %s17, 4
      %s24 = sphi 0, %s36
      %s25 = sphi 0, %s32
      %s26 = sphi 0, %s24
      %s27 = sphi 0, %s25
      %s28 = sphi 0, %s26
      %s29 = sphi 0, %s27
      %s41 = sphi 0, %s43
      %s44 = sphi 0, %s41
      %s45 = sphi 0, %s44
      %s61 = sphi 0, %s45
      %s65 = sphi 0, %s65
      %s67 = sphi 0, %s65
      %s68 = sphi 0, %s67
      %s82 = sphi 0, %s68
      %s86 = sphi 0, %s86
      %s88 = sphi 0, %s86
      %s89 = sphi 0, %s88
      %s103 = sphi 0, %s89
      %s111 = sphi 0, %s113
      %s114 = sphi 0, %s111
      %s115 = sphi 0, %s114
      %s131 = sphi 0, %s115
    $region4: #{tpu_custom_call.1} parent=1 // loop_header_branch
      %20 = sbr.rel (%p18) target = $region8
    $region5: #{tpu_custom_call.1} parent=1 // loop_body
      %s22 = ssub.s32 %s17, 1
      %s23 = ssub.s32 %s17, 2
      %s30 = sadd.s32 1, %s25
      %p31 = scmp.ge.s32.totalorder %s30, 1
      %s32 = scalar_select %p31, 0, %s30
      %s33 = sadd.s32 1, %s24
      %s34 = scalar_select %p31, %s33, %s24
      %p35 = scmp.ge.s32.totalorder %s34, 2
      %s36 = scalar_select %p35, 0, %s34
      %s37 = ssub.s32 %s24, %s36
      %s38 = ssub.s32 %s25, %s32
      %s39 = sor.u32 %s37, %s38
      %p40 = scmp.eq.s32.totalorder %s39, 0
      %s42 = sadd.s32 %s41, 1
      %s43 = scalar_select %p40, %s41, %s42
      %p46 = pneg %p40
      %p47 = scmp.eq.s32.totalorder %s17, 1
      %p48 = por %p46, %p47
      %p49 = scmp.ne.s32.totalorder %s41, %s44
      %p50 = scmp.eq.s32.totalorder %s17, 0
      %p51 = por %p49, %p50
      %p52 = scmp.ne.s32.totalorder %s41, %s44
      %p53 = scmp.eq.s32.totalorder %s22, 1
      %p54 = por %p52, %p53
      %p55 = scmp.ne.s32.totalorder %s44, %s45
      %p56 = scmp.eq.s32.totalorder %s22, 0
      %p57 = por %p55, %p56
      %p58 = scmp.ne.s32.totalorder %s44, %s45
      %p59 = scmp.eq.s32.totalorder %s23, 1
      %p60 = por %p58, %p59
      %p62 = scmp.ne.s32.totalorder %s45, %s61
      %p63 = scmp.eq.s32.totalorder %s23, 0
      %p64 = por %p62, %p63
      %s66 = sadd.s32 %s65, 1
      %p69 = scmp.eq.s32.totalorder %s17, 1
      %p70 = scmp.ne.s32.totalorder %s65, %s67
      %p71 = scmp.eq.s32.totalorder %s17, 0
      %p72 = por %p70, %p71
      %p73 = scmp.ne.s32.totalorder %s65, %s67
      %p74 = scmp.eq.s32.totalorder %s22, 1
      %p75 = por %p73, %p74
      %p76 = scmp.ne.s32.totalorder %s67, %s68
      %p77 = scmp.eq.s32.totalorder %s22, 0
      %p78 = por %p76, %p77
      %p79 = scmp.ne.s32.totalorder %s67, %s68
      %p80 = scmp.eq.s32.totalorder %s23, 1
      %p81 = por %p79, %p80
      %p83 = scmp.ne.s32.totalorder %s68, %s82
      %p84 = scmp.eq.s32.totalorder %s23, 0
      %p85 = por %p83, %p84
      %s87 = sadd.s32 %s86, 1
      %p90 = scmp.eq.s32.totalorder %s17, 1
      %p91 = scmp.ne.s32.totalorder %s86, %s88
      %p92 = scmp.eq.s32.totalorder %s17, 0
      %p93 = por %p91, %p92
      %p94 = scmp.ne.s32.totalorder %s86, %s88
      %p95 = scmp.eq.s32.totalorder %s22, 1
      %p96 = por %p94, %p95
      %p97 = scmp.ne.s32.totalorder %s88, %s89
      %p98 = scmp.eq.s32.totalorder %s22, 0
      %p99 = por %p97, %p98
      %p100 = scmp.ne.s32.totalorder %s88, %s89
      %p101 = scmp.eq.s32.totalorder %s23, 1
      %p102 = por %p100, %p101
      %p104 = scmp.ne.s32.totalorder %s89, %s103
      %p105 = scmp.eq.s32.totalorder %s23, 0
      %p106 = por %p104, %p105
      %s107 = ssub.s32 %s24, %s36
      %s108 = ssub.s32 %s25, %s32
      %s109 = sor.u32 %s107, %s108
      %p110 = scmp.eq.s32.totalorder %s109, 0
      %s112 = sadd.s32 %s111, 1
      %s113 = scalar_select %p110, %s111, %s112
      %p116 = pneg %p110
      %p117 = scmp.eq.s32.totalorder %s17, 1
      %p118 = por %p116, %p117
      %p119 = scmp.ne.s32.totalorder %s111, %s114
      %p120 = scmp.eq.s32.totalorder %s17, 0
      %p121 = por %p119, %p120
      %p122 = scmp.ne.s32.totalorder %s111, %s114
      %p123 = scmp.eq.s32.totalorder %s22, 1
      %p124 = por %p122, %p123
      %p125 = scmp.ne.s32.totalorder %s114, %s115
      %p126 = scmp.eq.s32.totalorder %s22, 0
      %p127 = por %p125, %p126
      %p128 = scmp.ne.s32.totalorder %s114, %s115
      %p129 = scmp.eq.s32.totalorder %s23, 1
      %p130 = por %p128, %p129
      %p132 = scmp.ne.s32.totalorder %s115, %s131
      %p133 = scmp.eq.s32.totalorder %s23, 0
      %p134 = por %p132, %p133
      %p135 = scmp.le.s32.totalorder 1, %s17
      %p136 = scmp.lt.s32.totalorder %s17, 3
      %p137 = pnand %p135, %p136
      %p138 = pneg %p137
      // Predicated region
      $region9: #{tpu_custom_call.1} parent=5 // pred_check
        _
      $region10: #{tpu_custom_call.1} parent=5 // pred_check_branch
        %140 = sbr.rel (%p137) target = $region12
      $region11: #{tpu_custom_call.1} parent=5 // pred_region
        %s141 = ssub.s32 %s17, 1
        // Predicated region
        $region13: #{tpu_custom_call.1} parent=11 // pred_check
          %p142 = pneg %p78
        $region14: #{tpu_custom_call.1} parent=11 // pred_check_branch
          %144 = sbr.rel (%p142) target = $region16
        $region15: #{tpu_custom_call.1} parent=11 // pred_region
          %146 = vsyncadd [#allocation5], 0
          %s148 = sshll.u32 %s1, 4
          %s149 = int_to_ptr.hbm [resolvable:$true] %s148
          %151 = dma.hbm_to_smem %s149, 16, [#allocation7], [#allocation5]
        $region16: #{tpu_custom_call.1} parent=11 // pred_fallthru
          _
        // Predicated region
        $region17: #{tpu_custom_call.1} parent=11 // pred_check
          %p152 = pneg %p99
        $region18: #{tpu_custom_call.1} parent=11 // pred_check_branch
          %154 = sbr.rel (%p152) target = $region20
        $region19: #{tpu_custom_call.1} parent=11 // pred_region
          %156 = vsyncadd [#allocation6], 0
          %s158 = sshll.u32 %s2, 4
          %s159 = int_to_ptr.vmem [resolvable:$true] %s158
          %161 = dma.vmem_to_smem %s159, 16, [#allocation8], [#allocation6]
        $region20: #{tpu_custom_call.1} parent=11 // pred_fallthru
          _
      $region12: #{tpu_custom_call.1} parent=5 // pred_fallthru
        _
      %p162 = scmp.lt.s32.totalorder %s17, 2
      // Predicated region
      $region21: #{tpu_custom_call.1} parent=5 // pred_check
        %p163 = pneg %p162
      $region22: #{tpu_custom_call.1} parent=5 // pred_check_branch
        %165 = sbr.rel (%p163) target = $region24
      $region23: #{tpu_custom_call.1} parent=5 // pred_region
        // Predicated region
        $region25: #{tpu_custom_call.1} parent=23 // pred_check
          %p166 = pneg %p51
        $region26: #{tpu_custom_call.1} parent=23 // pred_check_branch
          %168 = sbr.rel (%p166) target = $region28
        $region27: #{tpu_custom_call.1} parent=23 // pred_region
          %s169 = sand.u32 %s41, 1
          %s170 = scalar_lea.sflag [#allocation3], %s169
          %s171 = sand.u32 %s41, 1
          %s172 = smul.addr %s171, 8
          %s173 = scalar_lea.vmem [#allocation2], %s172
          %175 = vsyncadd %s170, 0
          %s176 = smul.addr %s24, 4
          %s177 = sadd.s32 %s25, %s176
          %s178 = smul.addr %s177, 2
          %s179 = scalar_lea.hbm %s0, %s178
          %s180 = sshll.u32 %s179, 4
          %s181 = int_to_ptr.hbm [resolvable:$true] %s180
          %s182 = sshll.u32 %s173, 4
          %s183 = int_to_ptr.vmem [resolvable:$true] %s182
          %188 = dma.hbm_to_vmem [thread:$0]  %s181, 128, %s183, %s170, 32, 32, 2
        $region28: #{tpu_custom_call.1} parent=23 // pred_fallthru
          _
      $region24: #{tpu_custom_call.1} parent=5 // pred_fallthru
        _
      %p189 = scmp.le.s32.totalorder 1, %s17
      %p190 = scmp.lt.s32.totalorder %s17, 3
      %p191 = pnand %p189, %p190
      %p192 = pneg %p191
      // Predicated region
      $region29: #{tpu_custom_call.1} parent=5 // pred_check
        _
      $region30: #{tpu_custom_call.1} parent=5 // pred_check_branch
        %194 = sbr.rel (%p191) target = $region32
      $region31: #{tpu_custom_call.1} parent=5 // pred_region
        %s195 = ssub.s32 %s17, 1
        %s196 = sand.u32 %s44, 1
        %s197 = scalar_lea.sflag [#allocation3], %s196
        %s198 = sand.u32 %s44, 1
        %s199 = smul.addr %s198, 8
        %s200 = scalar_lea.vmem [#allocation2], %s199
        // Predicated region
        $region33: #{tpu_custom_call.1} parent=31 // pred_check
          %p201 = pneg %p57
        $region34: #{tpu_custom_call.1} parent=31 // pred_check_branch
          %203 = sbr.rel (%p201) target = $region36
        $region35: #{tpu_custom_call.1} parent=31 // pred_region
          %205 = dma.done %s197, 128
        $region36: #{tpu_custom_call.1} parent=31 // pred_fallthru
          _
        // Predicated region
        $region37: #{tpu_custom_call.1} parent=31 // pred_check
          %p206 = pneg %p78
        $region38: #{tpu_custom_call.1} parent=31 // pred_check_branch
          %208 = sbr.rel (%p206) target = $region40
        $region39: #{tpu_custom_call.1} parent=31 // pred_region
          %210 = dma.done [#allocation5], 16
        $region40: #{tpu_custom_call.1} parent=31 // pred_fallthru
          _
        // Predicated region
        $region41: #{tpu_custom_call.1} parent=31 // pred_check
          %p211 = pneg %p99
        $region42: #{tpu_custom_call.1} parent=31 // pred_check_branch
          %213 = sbr.rel (%p211) target = $region44
        $region43: #{tpu_custom_call.1} parent=31 // pred_region
          %215 = dma.done [#allocation6], 16
        $region44: #{tpu_custom_call.1} parent=31 // pred_fallthru
          _
        %216 = sfence
        %s217 = sand.u32 %s44, 1
        %s218 = scalar_lea.sflag [#allocation3], %s217
        %s219 = sand.u32 %s44, 1
        %s220 = smul.addr %s219, 8
        %s221 = scalar_lea.vmem [#allocation2], %s220
        %p222 = pneg %p57
        %p223 = pneg %p54
        %p224 = pneg %p78
        %p225 = pneg %p75
        %p226 = pneg %p99
        %p227 = pneg %p96
        %p228 = pneg %p127
        %p229 = pneg %p124
        %s230 = sand.u32 %s114, 1
        %s231 = scalar_lea.sflag [#allocation4], %s230
        %s232 = sand.u32 %s114, 1
        %s233 = smul.addr %s232, 6
        %s234 = scalar_lea.vmem [#allocation9], %s233
        %v235 = vld [vmem:[%s200] sm:$0x3]
        %s236 = scalar_lea.vmem %s200, 2 [#allocation2]
        %v237 = vld [vmem:[%s236] sm:$0x3]
        %s238 = scalar_lea.vmem %s200, 4 [#allocation2]
        %v239 = vld [vmem:[%s238] sm:$0x3]
        %s240 = scalar_lea.vmem %s200, 6 [#allocation2]
        %v241 = vld [vmem:[%s240] sm:$0x3]
        %s242 = sld [smem:[#allocation7]]
        %v243 = vstv %s242
        %v244 = vmul.f32 %v235, %v243
        %s245 = sld [smem:[#allocation8]]
        %v246 = vstv %s245
        %v247 = vadd.f32 %v244, %v246
        %s248 = sld [smem:[#allocation7 + $0x1]]
        %v249 = vstv %s248
        %v250 = vmul.f32 %v237, %v249
        %v251 = vadd.f32 %v247, %v250
        %s252 = sld [smem:[#allocation7 + $0x2]]
        %v253 = vstv %s252
        %v254 = vmul.f32 %v239, %v253
        %v255 = vadd.f32 %v251, %v254
        %s256 = sld [smem:[#allocation7 + $0x3]]
        %v257 = vstv %s256
        %v258 = vmul.f32 %v241, %v257
        %v259 = vadd.f32 %v255, %v258
        %260 = vst [vmem:[%s234] sm:$0x3] %v259
        %s261 = sld [smem:[#allocation7 + $0x4]]
        %v262 = vstv %s261
        %v263 = vmul.f32 %v235, %v262
        %s264 = sld [smem:[#allocation8 + $0x1]]
        %v265 = vstv %s264
        %v266 = vadd.f32 %v263, %v265
        %s267 = sld [smem:[#allocation7 + $0x5]]
        %v268 = vstv %s267
        %v269 = vmul.f32 %v237, %v268
        %v270 = vadd.f32 %v266, %v269
        %s271 = sld [smem:[#allocation7 + $0x6]]
        %v272 = vstv %s271
        %v273 = vmul.f32 %v239, %v272
        %v274 = vadd.f32 %v270, %v273
        %s275 = sld [smem:[#allocation7 + $0x7]]
        %v276 = vstv %s275
        %v277 = vmul.f32 %v241, %v276
        %v278 = vadd.f32 %v274, %v277
        %s279 = scalar_lea.vmem %s234, 2 [#allocation9]
        %280 = vst [vmem:[%s279] sm:$0x3] %v278
        %s281 = sld [smem:[#allocation7 + $0x8]]
        %v282 = vstv %s281
        %v283 = vmul.f32 %v235, %v282
        %s284 = sld [smem:[#allocation8 + $0x2]]
        %v285 = vstv %s284
        %v286 = vadd.f32 %v283, %v285
        %s287 = sld [smem:[#allocation7 + $0x9]]
        %v288 = vstv %s287
        %v289 = vmul.f32 %v237, %v288
        %v290 = vadd.f32 %v286, %v289
        %s291 = sld [smem:[#allocation7 + $0xa]]
        %v292 = vstv %s291
        %v293 = vmul.f32 %v239, %v292
        %v294 = vadd.f32 %v290, %v293
        %s295 = sld [smem:[#allocation7 + $0xb]]
        %v296 = vstv %s295
        %v297 = vmul.f32 %v241, %v296
        %v298 = vadd.f32 %v294, %v297
        %s299 = scalar_lea.vmem %s234, 4 [#allocation9]
        %300 = vst [vmem:[%s299] sm:$0x3] %v298
        %s301 = sand.u32 %s114, 1
        %s302 = scalar_lea.sflag [#allocation4], %s301
        %s303 = sand.u32 %s114, 1
        %s304 = smul.addr %s303, 6
        %s305 = scalar_lea.vmem [#allocation9], %s304
        // Predicated region
        $region45: #{tpu_custom_call.1} parent=31 // pred_check
          %p306 = pneg %p124
        $region46: #{tpu_custom_call.1} parent=31 // pred_check_branch
          %308 = sbr.rel (%p306) target = $region48
        $region47: #{tpu_custom_call.1} parent=31 // pred_region
          %310 = vsyncadd %s302, 0
          %s311 = smul.addr %s26, 3
          %s312 = sadd.s32 %s27, %s311
          %s313 = smul.addr %s312, 2
          %s314 = scalar_lea.hbm %s3, %s313
          %s315 = sshll.u32 %s305, 4
          %s316 = int_to_ptr.vmem [resolvable:$true] %s315
          %s317 = sshll.u32 %s314, 4
          %s318 = int_to_ptr.hbm [resolvable:$true] %s317
          %323 = dma.vmem_to_hbm [thread:$0]  %s316, 96, %s318, %s302, 32, 32, 2
        $region48: #{tpu_custom_call.1} parent=31 // pred_fallthru
          _
      $region32: #{tpu_custom_call.1} parent=5 // pred_fallthru
        _
      %p324 = scmp.le.s32.totalorder 2, %s17
      // Predicated region
      $region49: #{tpu_custom_call.1} parent=5 // pred_check
        %p325 = pneg %p324
      $region50: #{tpu_custom_call.1} parent=5 // pred_check_branch
        %327 = sbr.rel (%p325) target = $region52
      $region51: #{tpu_custom_call.1} parent=5 // pred_region
        %s328 = ssub.s32 %s17, 2
        // Predicated region
        $region53: #{tpu_custom_call.1} parent=51 // pred_check
          %p329 = pneg %p130
        $region54: #{tpu_custom_call.1} parent=51 // pred_check_branch
          %331 = sbr.rel (%p329) target = $region56
        $region55: #{tpu_custom_call.1} parent=51 // pred_region
          %s332 = sand.u32 %s115, 1
          %s333 = scalar_lea.sflag [#allocation4], %s332
          %s334 = sand.u32 %s115, 1
          %s335 = smul.addr %s334, 6
          %s336 = scalar_lea.vmem [#allocation9], %s335
          %338 = dma.done %s333, 96
        $region56: #{tpu_custom_call.1} parent=51 // pred_fallthru
          _
      $region52: #{tpu_custom_call.1} parent=5 // pred_fallthru
        _
    $region6: #{tpu_custom_call.1} parent=1 // loop_footer
      %s21 = sadd.s32 1, %s17
    $region7: #{tpu_custom_call.1} parent=1 // loop_footer_branch
      %16 = sbr.rel target = $region3
    $region8: #{tpu_custom_call.1} parent=1 // loop_exit
      _
    %339 = vsyncpa [#allocation3], 1
    %s340 = scalar_lea.sflag [#allocation3], 1
    %341 = vsyncpa %s340, 1
    %342 = vsyncpa [#allocation4], 1
    %s343 = scalar_lea.sflag [#allocation4], 1
    %344 = vsyncpa %s343, 1
    %345 = vsyncpa [#allocation5], 1
    %s346 = scalar_lea.sflag [#allocation5], 1
    %347 = vsyncpa %s346, 1
    %348 = vsyncpa [#allocation6], 1
    %s349 = scalar_lea.sflag [#allocation6], 1
    %350 = vsyncpa %s349, 1

</llo_original>
